<compile_context>
chip_gen: v5e
topology: v5e:2x2
jax: 0.10.0
libtpu: 0.0.40
codegen_flags: <defaults>
</compile_context>

<pallas_src>
import functools

import jax
import jax.numpy as jnp
from jax.experimental import pallas as pl
from jax.experimental.pallas import tpu as pltpu


_LANE = 128
_TARGET_BLOCK_BYTES = 2 << 20     # ~2 MiB x-tiles: DMA time >> ~0.35 us step overhead
_MAX_BLOCK_BYTES = 4 << 20        # cap when growing b_tile
_VMEM_HEADROOM = 16 << 20         # weights + pipeline bookkeeping + compiler scratch
_FUSED_GATE_MARGIN = 24 << 20     # physical VMEM margin required to enable fusion


def _round_up(x, m):
    return ((x + m - 1) // m) * m


def _vmem_capacity_bytes():
    """Physical per-core VMEM; conservative 64 MiB (v7x) if it cannot be queried."""
    try:
        info = pltpu.get_tpu_info()
        cap = getattr(info, "vmem_capacity_bytes", None)
        if cap:
            return int(cap)
    except Exception:
        pass
    return 64 << 20


# ---------------------------------------------------------------------------
# Fused single-pass kernel: pool (+cache x in VMEM) -> excitation MLP -> scale.
# Grid = (B, 2, n_t); pass 0 reads x once, pass 1 writes x * gate from the cache.
# ---------------------------------------------------------------------------
def _fused_kernel(x_ref, w1_ref, b1_ref, w2_ref, b2_ref, o_ref,
                  cache_ref, acc_ref, gate_ref, *, inv_t, true_t, t_tile, masked):
    p = pl.program_id(1)
    t = pl.program_id(2)
    n_t = pl.num_programs(2)

    # ---- pass 0: stream x tiles in, cache them, accumulate the T-sum ----
    @pl.when(p == 0)
    def _():
        @pl.when(t == 0)
        def _():
            acc_ref[...] = jnp.zeros_like(acc_ref)

        xb = x_ref[...]                                       # (1, C, t_tile), x dtype
        off = pl.multiple_of(t * t_tile, _LANE)
        cache_ref[:, :, pl.ds(off, t_tile)] = xb              # VMEM-resident copy
        xf = xb.astype(jnp.float32)
        if masked:                                            # mask the padded tail tile
            col = jax.lax.broadcasted_iota(jnp.int32, xf.shape, 2) + t * t_tile
            xf = jnp.where(col < true_t, xf, 0.0)
        acc_ref[...] += jnp.sum(xf, axis=-1)                  # (1, C)

        @pl.when(t == n_t - 1)
        def _():
            y = acc_ref[...] * inv_t                          # mean over the TRUE T
            h = jnp.maximum(
                jnp.dot(y, w1_ref[...], preferred_element_type=jnp.float32)
                + b1_ref[...], 0.0)
            g = jax.nn.sigmoid(
                jnp.dot(h, w2_ref[...], preferred_element_type=jnp.float32)
                + b2_ref[...])
            gate_ref[...] = g[:, :, None]                     # (1, C, 1) f32

    # ---- pass 1: rescale the cached x tiles and stream them out ----
    @pl.when(p == 1)
    def _():
        off = pl.multiple_of(t * t_tile, _LANE)
        xb = cache_ref[:, :, pl.ds(off, t_tile)]
        o_ref[...] = xb * gate_ref[...].astype(xb.dtype)


def _channel_attention_fused(x, w1, b1, w2, b2, t_tile, n_t, vmem_limit):
    B, C, T = x.shape
    H = w1.shape[1]
    t_pad = n_t * t_tile
    masked = (t_pad != T)

    kernel = functools.partial(
        _fused_kernel, inv_t=1.0 / float(T), true_t=T, t_tile=t_tile, masked=masked)

    return pl.pallas_call(
        kernel,
        out_shape=jax.ShapeDtypeStruct((B, C, T), x.dtype),
        grid_spec=pltpu.PrefetchScalarGridSpec(
            num_scalar_prefetch=0,
            grid=(B, 2, n_t),
            in_specs=[
                # Pass 0 walks the T tiles; pass 1 parks on tile 0 (never read again).
                pl.BlockSpec((1, C, t_tile), lambda b, p, t: (b, 0, t * (1 - p))),
                pl.BlockSpec((C, H), lambda b, p, t: (0, 0)),   # resident weights
                pl.BlockSpec((1, H), lambda b, p, t: (0, 0)),
                pl.BlockSpec((H, C), lambda b, p, t: (0, 0)),
                pl.BlockSpec((1, C), lambda b, p, t: (0, 0)),
            ],
            # Pass 0 parks on output tile 0 (written later, at p=1 t=0, before flush).
            out_specs=pl.BlockSpec((1, C, t_tile), lambda b, p, t: (b, 0, t * p)),
            scratch_shapes=[
                pltpu.VMEM((1, C, t_pad), x.dtype),   # x cache (reused on pass 1)
                pltpu.VMEM((1, C), jnp.float32),      # T-sum accumulator
                pltpu.VMEM((1, C, 1), jnp.float32),   # per-row gate
            ],
        ),
        compiler_params=pltpu.CompilerParams(
            dimension_semantics=("parallel", "arbitrary", "arbitrary"),
            vmem_limit_bytes=vmem_limit,
        ),
    )(x, w1, b1, w2, b2)


# ---------------------------------------------------------------------------
# Two-pass fallback: tiled partial sums (parallel chunk axis) -> MLP in plain JAX
# -> tiled rescale.  Used when the per-row x cache would not fit VMEM.
# ---------------------------------------------------------------------------
def _pool_kernel(x_ref, sums_ref, acc_ref, *, true_t, t_tile, n_t_inner, masked):
    c = pl.program_id(1)
    t = pl.program_id(2)

    @pl.when(t == 0)
    def _():
        acc_ref[...] = jnp.zeros_like(acc_ref)

    xf = x_ref[...].astype(jnp.float32)                       # (b_tile, C, t_tile)
    if masked:
        col = (jax.lax.broadcasted_iota(jnp.int32, xf.shape, 2)
               + (c * n_t_inner + t) * t_tile)
        xf = jnp.where(col < true_t, xf, 0.0)
    acc_ref[...] += jnp.sum(xf, axis=-1)                      # (b_tile, C)

    @pl.when(t == n_t_inner - 1)
    def _():
        sums_ref[...] = acc_ref[...][None, :, None, :]        # (1, b_tile, 1, C)


def _scale_kernel(x_ref, g_ref, o_ref):
    x = x_ref[...]
    o_ref[...] = x * g_ref[...].astype(x.dtype)               # gate broadcasts over T


def _channel_attention_two_pass(x, w1, b1, w2, b2, b_tile, t_tile, n_t, vmem_limit):
    B, C, T = x.shape
    masked = (n_t * t_tile != T)

    # Split the T-tile loop into a parallel "chunk" axis so both v7x TensorCores
    # participate in the pooling read even when B == 1.
    n_chunks = 2 if (n_t >= 2 and n_t % 2 == 0) else 1
    n_t_inner = n_t // n_chunks

    # ---- phase 1: per-(chunk, batch) partial sums over T ----
    sums = pl.pallas_call(
        functools.partial(_pool_kernel, true_t=T, t_tile=t_tile,
                          n_t_inner=n_t_inner, masked=masked),
        out_shape=jax.ShapeDtypeStruct((n_chunks, B, 1, C), jnp.float32),
        grid_spec=pltpu.PrefetchScalarGridSpec(
            num_scalar_prefetch=0,
            grid=(B // b_tile, n_chunks, n_t_inner),
            in_specs=[pl.BlockSpec((b_tile, C, t_tile),
                                   lambda b, c, t: (b, 0, c * n_t_inner + t))],
            out_specs=pl.BlockSpec((1, b_tile, 1, C), lambda b, c, t: (c, b, 0, 0)),
            scratch_shapes=[pltpu.VMEM((b_tile, C), jnp.float32)],
        ),
        compiler_params=pltpu.CompilerParams(
            dimension_semantics=("parallel", "parallel", "arbitrary"),
            vmem_limit_bytes=vmem_limit,
        ),
    )(x)

    # ---- tiny excitation MLP in plain JAX (keeps the MXU out of the kernel) ----
    mean = sums.sum(axis=0)[:, 0, :] * (1.0 / float(T))       # (B, C) f32
    h = jnp.maximum(mean @ w1 + b1, 0.0)
    gate = jax.nn.sigmoid(h @ w2 + b2).astype(jnp.float32)[:, :, None]   # (B, C, 1)

    # ---- phase 2: rescale x by the gate, tile by tile ----
    return pl.pallas_call(
        _scale_kernel,
        out_shape=jax.ShapeDtypeStruct((B, C, T), x.dtype),
        grid_spec=pltpu.PrefetchScalarGridSpec(
            num_scalar_prefetch=0,
            grid=(B // b_tile, n_t),
            in_specs=[
                pl.BlockSpec((b_tile, C, t_tile), lambda b, t: (b, 0, t)),
                pl.BlockSpec((b_tile, C, 1), lambda b, t: (b, 0, 0)),   # resident gate
            ],
            out_specs=pl.BlockSpec((b_tile, C, t_tile), lambda b, t: (b, 0, t)),
        ),
        compiler_params=pltpu.CompilerParams(
            dimension_semantics=("parallel", "parallel"),
            vmem_limit_bytes=vmem_limit,
        ),
    )(x, gate)


# ---------------------------------------------------------------------------
# Planner / public entry point.
# ---------------------------------------------------------------------------
def _pick_b_tile(B, C, t_tile, dsize, target_bytes, max_bytes):
    best = 1
    for d in range(1, B + 1):
        if B % d != 0:
            continue
        if d > 1 and B // d < 2:     # keep >=2 grid points on the parallel B axis
            break
        blk = d * C * t_tile * dsize
        if blk > max_bytes:
            break
        best = d
        if blk >= target_bytes:
            break
    return best


def channel_attention(x, w1, b1, w2, b2, *,
                      target_block_bytes=_TARGET_BLOCK_BYTES,
                      force_two_pass=False):
    """x: (B, C, T); w1: (C, H); b1: (1, H); w2: (H, C); b2: (1, C).

    Linear weights are passed pre-transposed as (in, out), matching nn.Linear's W^T.
    """
    B, C, T = x.shape
    dsize = x.dtype.itemsize

    # Lane-dense T tiles, sized so each x block is ~target_block_bytes.
    row_t = _round_up(T, _LANE)
    t_tile = min(row_t,
                 _round_up(max(_LANE, target_block_bytes // (C * dsize)), _LANE))
    n_t = pl.cdiv(T, t_tile)
    t_pad = n_t * t_tile

    cap = _vmem_capacity_bytes()
    w_bytes = 2 * sum(int(a.size) * a.dtype.itemsize for a in (w1, b1, w2, b2))

    # Fused path VMEM need: x cache + double-buffered in/out tiles + weights + gate.
    fused_need = (C * t_pad * dsize
                  + 4 * C * t_tile * dsize
                  + w_bytes
                  + 16 * C * 4)

    if not force_two_pass and fused_need <= cap - _FUSED_GATE_MARGIN:
        vmem_limit = int(min(cap - (8 << 20),
                             max(32 << 20, fused_need + _VMEM_HEADROOM)))
        return _channel_attention_fused(x, w1, b1, w2, b2, t_tile, n_t, vmem_limit)

    # Two-pass fallback: grow b_tile when a whole (1, C, row) block is still small.
    b_tile = 1
    if t_tile >= row_t and B > 1:
        b_tile = _pick_b_tile(B, C, t_tile, dsize, target_block_bytes, _MAX_BLOCK_BYTES)
    two_need = 4 * b_tile * C * t_tile * dsize + (1 << 20)
    vmem_limit = int(min(cap - (8 << 20), max(32 << 20, two_need + _VMEM_HEADROOM)))
    return _channel_attention_two_pass(x, w1, b1, w2, b2, b_tile, t_tile, n_t,
                                       vmem_limit)


def channel_attention_ref(x, w1, b1, w2, b2):
    y = jnp.mean(x.astype(jnp.float32), axis=-1)
    h = jnp.maximum(y @ w1 + b1, 0.0)
    s = jax.nn.sigmoid(h @ w2 + b2)
    return (x.astype(jnp.float32) * s[:, :, None]).astype(x.dtype)


if __name__ == "__main__":
    def run_case(B, C, T, *, target_block_bytes=_TARGET_BLOCK_BYTES,
                 force_two_pass=False):
        H = max(1, C // 16)
        kx, k1, kb1, k2, kb2 = jax.random.split(jax.random.PRNGKey(0), 5)
        x = jax.random.normal(kx, (B, C, T), dtype=jnp.float32)
        w1 = jax.random.normal(k1, (C, H), dtype=jnp.float32) * (1.0 / jnp.sqrt(C))
        b1 = jax.random.normal(kb1, (1, H), dtype=jnp.float32) * 0.01
        w2 = jax.random.normal(k2, (H, C), dtype=jnp.float32) * (1.0 / jnp.sqrt(H))
        b2 = jax.random.normal(kb2, (1, C), dtype=jnp.float32) * 0.01

        out = jax.block_until_ready(
            channel_attention(x, w1, b1, w2, b2,
                              target_block_bytes=target_block_bytes,
                              force_two_pass=force_two_pass))
        ref = channel_attention_ref(x, w1, b1, w2, b2)
        assert out.shape == (B, C, T)
        assert jnp.allclose(out, ref, atol=1e-5, rtol=1e-5), (
            f"mismatch B={B} C={C} T={T} two_pass={force_two_pass}")

    # Shapes consistent with ChannelAttention(channels=32) — the last decoder stage.
    run_case(2, 32, 1024)                                              # fused, 1 tile
    run_case(2, 32, 1024, target_block_bytes=64 << 10)                 # fused, 2 tiles
    run_case(2, 32, 1000, target_block_bytes=64 << 10)                 # fused, masked tail
    run_case(2, 32, 1024, target_block_bytes=64 << 10,
             force_two_pass=True)                                      # 2-pass, chunk split
    run_case(2, 32, 1000, target_block_bytes=64 << 10,
             force_two_pass=True)                                      # 2-pass, masked tail
    run_case(8, 8, 256, force_two_pass=True)                           # 2-pass, b_tile > 1

    print("KERNEL_OK")
</pallas_src>

<mosaic_0001>
module attributes {stable_mosaic.version = 11 : i64} {
  func.func @_fused_kernel(%arg0: i32, %arg1: i32, %arg2: i32, %arg3: memref<1x32x1024xf32, #tpu.memory_space<vmem>>, %arg4: memref<32x2xf32, #tpu.memory_space<vmem>>, %arg5: memref<1x2xf32, #tpu.memory_space<vmem>>, %arg6: memref<2x32xf32, #tpu.memory_space<vmem>>, %arg7: memref<1x32xf32, #tpu.memory_space<vmem>>, %arg8: memref<1x32x1024xf32, #tpu.memory_space<vmem>>, %arg9: memref<1x32x1024xf32, #tpu.memory_space<vmem>>, %arg10: memref<1x32xf32, #tpu.memory_space<vmem>>, %arg11: memref<1x32x1xf32, #tpu.memory_space<vmem>>) attributes {dimension_semantics = [#tpu.dimension_semantics<parallel>, #tpu.dimension_semantics<arbitrary>, #tpu.dimension_semantics<arbitrary>], iteration_bounds = array<i64: 2, 2, 1>, scalar_prefetch = 0 : i64, scratch_operands = 3 : i64, tpu.core_type = #tpu.core_type<tc>, window_params = [{transform_indices = @transform_0, window_bounds = array<i64: 1, 32, 1024>}, {pipeline_mode = #tpu.pipeline_mode<synchronous>, transform_indices = @transform_1, window_bounds = array<i64: 32, 2>}, {pipeline_mode = #tpu.pipeline_mode<synchronous>, transform_indices = @transform_2, window_bounds = array<i64: 1, 2>}, {pipeline_mode = #tpu.pipeline_mode<synchronous>, transform_indices = @transform_3, window_bounds = array<i64: 2, 32>}, {pipeline_mode = #tpu.pipeline_mode<synchronous>, transform_indices = @transform_4, window_bounds = array<i64: 1, 32>}, {transform_indices = @transform_5, window_bounds = array<i64: 1, 32, 1024>}]} {
    %c0_i32 = arith.constant 0 : i32
    %0 = arith.cmpi eq, %arg1, %c0_i32 : i32
    %1 = arith.extui %0 : i1 to i32
    %c0_i32_0 = arith.constant 0 : i32
    %2 = arith.cmpi ne, %1, %c0_i32_0 : i32
    scf.if %2 {
      %c0_i32_2 = arith.constant 0 : i32
      %6 = arith.cmpi eq, %arg2, %c0_i32_2 : i32
      %7 = arith.extui %6 : i1 to i32
      %c0_i32_3 = arith.constant 0 : i32
      %8 = arith.cmpi ne, %7, %c0_i32_3 : i32
      scf.if %8 {
        %cst_14 = arith.constant 0.000000e+00 : f32
        %21 = vector.broadcast %cst_14 : f32 to vector<1x32xf32>
        %c0_15 = arith.constant 0 : index
        %c0_16 = arith.constant 0 : index
        %22 = vector.load %arg10[%c0_15, %c0_16] : memref<1x32xf32, #tpu.memory_space<vmem>>, vector<1x32xf32>
        tpu.vector_store %arg10[%c0_15, %c0_16], %21 {strides = array<i32>} : memref<1x32xf32, #tpu.memory_space<vmem>>, vector<1x32xf32>,
      } else {
      }
      %c0 = arith.constant 0 : index
      %c0_4 = arith.constant 0 : index
      %c0_5 = arith.constant 0 : index
      %9 = vector.load %arg3[%c0, %c0_4, %c0_5] : memref<1x32x1024xf32, #tpu.memory_space<vmem>>, vector<1x32x1024xf32>
      %c1024_i32 = arith.constant 1024 : i32
      %10 = arith.muli %arg2, %c1024_i32 : i32
      %11 = tpu.assume_multiple %10, 128 : i32
      %c0_6 = arith.constant 0 : index
      %c0_7 = arith.constant 0 : index
      %12 = arith.index_cast %11 : i32 to index
      %13 = vector.load %arg9[%c0_6, %c0_7, %12] : memref<1x32x1024xf32, #tpu.memory_space<vmem>>, vector<1x32x1024xf32>
      tpu.vector_store %arg9[%c0_6, %c0_7, %12], %9 {strides = array<i32>} : memref<1x32x1024xf32, #tpu.memory_space<vmem>>, vector<1x32x1024xf32>,
      %c0_8 = arith.constant 0 : index
      %c0_9 = arith.constant 0 : index
      %14 = vector.load %arg10[%c0_8, %c0_9] : memref<1x32xf32, #tpu.memory_space<vmem>>, vector<1x32xf32>
      %cst = arith.constant dense<0.000000e+00> : vector<1x32xf32>
      %15 = vector.multi_reduction <add>, %9, %cst [2] : vector<1x32x1024xf32> to vector<1x32xf32>
      %16 = arith.addf %14, %15 : vector<1x32xf32>
      %c0_10 = arith.constant 0 : index
      %c0_11 = arith.constant 0 : index
      %17 = vector.load %arg10[%c0_10, %c0_11] : memref<1x32xf32, #tpu.memory_space<vmem>>, vector<1x32xf32>
      tpu.vector_store %arg10[%c0_10, %c0_11], %16 {strides = array<i32>} : memref<1x32xf32, #tpu.memory_space<vmem>>, vector<1x32xf32>,
      %c0_i32_12 = arith.constant 0 : i32
      %18 = arith.cmpi eq, %arg2, %c0_i32_12 : i32
      %19 = arith.extui %18 : i1 to i32
      %c0_i32_13 = arith.constant 0 : i32
      %20 = arith.cmpi ne, %19, %c0_i32_13 : i32
      scf.if %20 {
        %c0_14 = arith.constant 0 : index
        %c0_15 = arith.constant 0 : index
        %21 = vector.load %arg10[%c0_14, %c0_15] : memref<1x32xf32, #tpu.memory_space<vmem>>, vector<1x32xf32>
        %cst_16 = arith.constant 9.765625E-4 : f32
        %22 = vector.broadcast %cst_16 : f32 to vector<1x32xf32>
        %23 = arith.mulf %21, %22 : vector<1x32xf32>
        %c0_17 = arith.constant 0 : index
        %c0_18 = arith.constant 0 : index
        %24 = vector.load %arg4[%c0_17, %c0_18] : memref<32x2xf32, #tpu.memory_space<vmem>>, vector<32x2xf32>
        %cst_19 = arith.constant dense<0.000000e+00> : vector<1x2xf32>
        %25 = tpu.matmul %23, %24, %cst_19 {dimension_numbers = #tpu.dot_dimension_numbers<[1], [0], [0], [1], [0, 0, 1, 1], [], []>} : vector<1x32xf32>, vector<32x2xf32>, vector<1x2xf32> -> vector<1x2xf32>
        %c0_20 = arith.constant 0 : index
        %c0_21 = arith.constant 0 : index
        %26 = vector.load %arg5[%c0_20, %c0_21] : memref<1x2xf32, #tpu.memory_space<vmem>>, vector<1x2xf32>
        %27 = arith.addf %25, %26 : vector<1x2xf32>
        %cst_22 = arith.constant 0.000000e+00 : f32
        %28 = vector.broadcast %cst_22 : f32 to vector<1x2xf32>
        %29 = arith.maximumf %27, %28 : vector<1x2xf32>
        %c0_23 = arith.constant 0 : index
        %c0_24 = arith.constant 0 : index
        %30 = vector.load %arg6[%c0_23, %c0_24] : memref<2x32xf32, #tpu.memory_space<vmem>>, vector<2x32xf32>
        %cst_25 = arith.constant dense<0.000000e+00> : vector<1x32xf32>
        %31 = tpu.matmul %29, %30, %cst_25 {dimension_numbers = #tpu.dot_dimension_numbers<[1], [0], [0], [1], [0, 0, 1, 1], [], []>} : vector<1x2xf32>, vector<2x32xf32>, vector<1x32xf32> -> vector<1x32xf32>
        %c0_26 = arith.constant 0 : index
        %c0_27 = arith.constant 0 : index
        %32 = vector.load %arg7[%c0_26, %c0_27] : memref<1x32xf32, #tpu.memory_space<vmem>>, vector<1x32xf32>
        %33 = arith.addf %31, %32 : vector<1x32xf32>
        %34 = arith.negf %33 : vector<1x32xf32>
        %35 = math.exp %34 : vector<1x32xf32>
        %cst_28 = arith.constant 1.000000e+00 : f32
        %36 = vector.broadcast %cst_28 : f32 to vector<1x32xf32>
        %37 = arith.addf %36, %35 : vector<1x32xf32>
        %38 = arith.divf %36, %37 : vector<1x32xf32>
        %39 = vector.shape_cast %38 : vector<1x32xf32> to vector<1x32x1xf32>
        %c0_29 = arith.constant 0 : index
        %c0_30 = arith.constant 0 : index
        %c0_31 = arith.constant 0 : index
        %40 = vector.load %arg11[%c0_29, %c0_30, %c0_31] : memref<1x32x1xf32, #tpu.memory_space<vmem>>, vector<1x32x1xf32>
        tpu.vector_store %arg11[%c0_29, %c0_30, %c0_31], %39 {strides = array<i32>} : memref<1x32x1xf32, #tpu.memory_space<vmem>>, vector<1x32x1xf32>,
      } else {
      }
    } else {
    }
    %c1_i32 = arith.constant 1 : i32
    %3 = arith.cmpi eq, %arg1, %c1_i32 : i32
    %4 = arith.extui %3 : i1 to i32
    %c0_i32_1 = arith.constant 0 : i32
    %5 = arith.cmpi ne, %4, %c0_i32_1 : i32
    scf.if %5 {
      %c1024_i32 = arith.constant 1024 : i32
      %6 = arith.muli %arg2, %c1024_i32 : i32
      %7 = tpu.assume_multiple %6, 128 : i32
      %c0 = arith.constant 0 : index
      %c0_2 = arith.constant 0 : index
      %8 = arith.index_cast %7 : i32 to index
      %9 = vector.load %arg9[%c0, %c0_2, %8] : memref<1x32x1024xf32, #tpu.memory_space<vmem>>, vector<1x32x1024xf32>
      %c0_3 = arith.constant 0 : index
      %c0_4 = arith.constant 0 : index
      %c0_5 = arith.constant 0 : index
      %10 = vector.load %arg11[%c0_3, %c0_4, %c0_5] : memref<1x32x1xf32, #tpu.memory_space<vmem>>, vector<1x32x1xf32>
      %11 = vector.broadcast %10 : vector<1x32x1xf32> to vector<1x32x1024xf32>
      %12 = arith.mulf %9, %11 : vector<1x32x1024xf32>
      %c0_6 = arith.constant 0 : index
      %c0_7 = arith.constant 0 : index
      %c0_8 = arith.constant 0 : index
      %13 = vector.load %arg8[%c0_6, %c0_7, %c0_8] : memref<1x32x1024xf32, #tpu.memory_space<vmem>>, vector<1x32x1024xf32>
      tpu.vector_store %arg8[%c0_6, %c0_7, %c0_8], %12 {strides = array<i32>} : memref<1x32x1024xf32, #tpu.memory_space<vmem>>, vector<1x32x1024xf32>,
    } else {
    }
    return
  }
  func.func @transform_0(%arg0: i32, %arg1: i32, %arg2: i32) -> (i32, i32, i32) {
    %c1_i32 = arith.constant 1 : i32
    %0 = arith.subi %c1_i32, %arg1 : i32
    %1 = arith.muli %arg2, %0 : i32
    %c0_i32 = arith.constant 0 : i32
    %c0_i32_0 = arith.constant 0 : i32
    return %arg0, %c0_i32, %1 : i32, i32, i32
  }
  func.func @transform_1(%arg0: i32, %arg1: i32, %arg2: i32) -> (i32, i32) {
    %c0_i32 = arith.constant 0 : i32
    %c0_i32_0 = arith.constant 0 : i32
    %c0_i32_1 = arith.constant 0 : i32
    return %c0_i32, %c0_i32_0 : i32, i32
  }
  func.func @transform_2(%arg0: i32, %arg1: i32, %arg2: i32) -> (i32, i32) {
    %c0_i32 = arith.constant 0 : i32
    %c0_i32_0 = arith.constant 0 : i32
    %c0_i32_1 = arith.constant 0 : i32
    return %c0_i32, %c0_i32_0 : i32, i32
  }
  func.func @transform_3(%arg0: i32, %arg1: i32, %arg2: i32) -> (i32, i32) {
    %c0_i32 = arith.constant 0 : i32
    %c0_i32_0 = arith.constant 0 : i32
    %c0_i32_1 = arith.constant 0 : i32
    return %c0_i32, %c0_i32_0 : i32, i32
  }
  func.func @transform_4(%arg0: i32, %arg1: i32, %arg2: i32) -> (i32, i32) {
    %c0_i32 = arith.constant 0 : i32
    %c0_i32_0 = arith.constant 0 : i32
    %c0_i32_1 = arith.constant 0 : i32
    return %c0_i32, %c0_i32_0 : i32, i32
  }
  func.func @transform_5(%arg0: i32, %arg1: i32, %arg2: i32) -> (i32, i32, i32) {
    %0 = arith.muli %arg2, %arg1 : i32
    %c0_i32 = arith.constant 0 : i32
    %c0_i32_0 = arith.constant 0 : i32
    return %arg0, %c0_i32, %0 : i32, i32, i32
  }
}

</mosaic_0001>

<llo_original>
// kernel: tpu_custom_call.1
$region0: #{tpu_custom_call.1}
  #allocation0 [shape = 'u32[]', space=smem, size = 0x4, offset = 0x4, fixed_abs, tag = 'smem constant byte address 0x4 - core index']
  #allocation1 [shape = 'u32[72,128]{1,0:T(1,128)}', space=vmem, size = 0x9000, scoped, tag = 'internal scratch']
  #allocation2 [shape = 'f32[1,32,1024]{2,1,0:T(8,128)}', space=vmem, size = 0x20000, scoped, tag = 'scratch operand']
  #allocation3 [shape = 'f32[1,32]{1,0:T(1,128)}', space=vmem, size = 0x200, scoped, tag = 'scratch operand']
  #allocation4 [shape = 'f32[1,32,1]{2,1,0:T(8,128)}', space=vmem, size = 0x4000, scoped, tag = 'scratch operand']
  %s0 = inlined_call_operand.hbm [shape: f32[2,32,1024], index: 0, kind: input, shape index: {}]
  %s1 = inlined_call_operand.vmem [shape: f32[32,2], index: 1, kind: input, shape index: {}]
  %s2 = inlined_call_operand.vmem [shape: f32[1,2], index: 2, kind: input, shape index: {}]
  %s3 = inlined_call_operand.vmem [shape: f32[2,32], index: 3, kind: input, shape index: {}]
  %s4 = inlined_call_operand.vmem [shape: f32[1,32], index: 4, kind: input, shape index: {}]
  %s5 = inlined_call_operand.hbm [shape: f32[2,32,1024], index: 5, kind: output, shape index: {}]
  %s6 = sld [smem:[#allocation0]]
  $region73: #{tpu_custom_call.1} parent=0
    _
  %s8 = ssub.s32 1, %s6
  %s9 = scalar_select 0, %s8, %s6
  $region1: #{tpu_custom_call.1} parent=0
    #allocation5 [shape = 'u8[262144]{0}', space=vmem, size = 0x40000, scoped, tag = 'input window, operand 0']
    #allocation6 [shape = 's32[2]{0}', space=sflag, size = 0x8, scoped, tag = 'scoped memory for tpu_custom_call.1']
    #allocation7 [shape = 's32[2]{0}', space=sflag, size = 0x8, scoped, tag = 'scoped memory for tpu_custom_call.1']
    #allocation8 [shape = 'u8[262144]{0}', space=vmem, size = 0x40000, scoped, tag = 'output window, operand 0']
    %10 = vsyncpa [#allocation6], 0
    %s11 = scalar_lea.sflag [#allocation6], 1
    %12 = vsyncpa %s11, 0
    %13 = vsyncpa [#allocation7], 0
    %s14 = scalar_lea.sflag [#allocation7], 1
    %15 = vsyncpa %s14, 0
    loop: start=0, step=1, limit=6
    $region2: #{tpu_custom_call.1} parent=1 // loop_pre_header
      _
    $region3: #{tpu_custom_call.1} parent=1 // loop_header
      %s17 = sphi 0, %s21
      %p18 = scmp.ge.s32.totalorder %s17, 6
      %s24 = sphi 0, %s43
      %s25 = sphi 0, %s39
      %s26 = sphi 0, %s35
      %s27 = sphi 0, %s24
      %s28 = sphi 0, %s25
      %s29 = sphi 0, %s26
      %s30 = sphi 0, %s27
      %s31 = sphi 0, %s28
      %s32 = sphi 0, %s29
      %s52 = sphi 0, %s54
      %s55 = sphi 0, %s52
      %s56 = sphi 0, %s55
      %s72 = sphi 0, %s56
      %s76 = sphi 0, %s76
      %s78 = sphi 0, %s76
      %s79 = sphi 0, %s78
      %s93 = sphi 0, %s79
      %s97 = sphi 0, %s97
      %s99 = sphi 0, %s97
      %s100 = sphi 0, %s99
      %s114 = sphi 0, %s100
      %s118 = sphi 0, %s118
      %s120 = sphi 0, %s118
      %s121 = sphi 0, %s120
      %s135 = sphi 0, %s121
      %s139 = sphi 0, %s139
      %s141 = sphi 0, %s139
      %s142 = sphi 0, %s141
      %s156 = sphi 0, %s142
      %s166 = sphi 0, %s168
      %s169 = sphi 0, %s166
      %s170 = sphi 0, %s169
      %s186 = sphi 0, %s170
    $region4: #{tpu_custom_call.1} parent=1 // loop_header_branch
      %20 = sbr.rel (%p18) target = $region8
    $region5: #{tpu_custom_call.1} parent=1 // loop_body
      %s22 = ssub.s32 %s17, 1
      %s23 = ssub.s32 %s17, 2
      %s33 = sadd.s32 1, %s26
      %p34 = scmp.ge.s32.totalorder %s33, 1
      %s35 = scalar_select %p34, 0, %s33
      %s36 = sadd.s32 1, %s25
      %s37 = scalar_select %p34, %s36, %s25
      %p38 = scmp.ge.s32.totalorder %s37, 2
      %s39 = scalar_select %p38, 0, %s37
      %s40 = sadd.s32 1, %s24
      %s41 = scalar_select %p38, %s40, %s24
      %p42 = scmp.ge.s32.totalorder %s41, 2
      %s43 = scalar_select %p42, 0, %s41
      %s44 = ssub.s32 1, %s25
      %s45 = smul.u32 %s26, %s44
      %s46 = ssub.s32 1, %s39
      %s47 = smul.u32 %s35, %s46
      %s48 = ssub.s32 %s24, %s43
      %s49 = ssub.s32 %s45, %s47
      %s50 = sor.u32 %s48, %s49
      %p51 = scmp.eq.s32.totalorder %s50, 0
      %s53 = sadd.s32 %s52, 1
      %s54 = scalar_select %p51, %s52, %s53
      %p57 = pneg %p51
      %p58 = scmp.eq.s32.totalorder %s17, 3
      %p59 = por %p57, %p58
      %p60 = scmp.ne.s32.totalorder %s52, %s55
      %p61 = scmp.eq.s32.totalorder %s17, 0
      %p62 = por %p60, %p61
      %p63 = scmp.ne.s32.totalorder %s52, %s55
      %p64 = scmp.eq.s32.totalorder %s22, 3
      %p65 = por %p63, %p64
      %p66 = scmp.ne.s32.totalorder %s55, %s56
      %p67 = scmp.eq.s32.totalorder %s22, 0
      %p68 = por %p66, %p67
      %p69 = scmp.ne.s32.totalorder %s55, %s56
      %p70 = scmp.eq.s32.totalorder %s23, 3
      %p71 = por %p69, %p70
      %p73 = scmp.ne.s32.totalorder %s56, %s72
      %p74 = scmp.eq.s32.totalorder %s23, 0
      %p75 = por %p73, %p74
      %s77 = sadd.s32 %s76, 1
      %p80 = scmp.eq.s32.totalorder %s17, 3
      %p81 = scmp.ne.s32.totalorder %s76, %s78
      %p82 = scmp.eq.s32.totalorder %s17, 0
      %p83 = por %p81, %p82
      %p84 = scmp.ne.s32.totalorder %s76, %s78
      %p85 = scmp.eq.s32.totalorder %s22, 3
      %p86 = por %p84, %p85
      %p87 = scmp.ne.s32.totalorder %s78, %s79
      %p88 = scmp.eq.s32.totalorder %s22, 0
      %p89 = por %p87, %p88
      %p90 = scmp.ne.s32.totalorder %s78, %s79
      %p91 = scmp.eq.s32.totalorder %s23, 3
      %p92 = por %p90, %p91
      %p94 = scmp.ne.s32.totalorder %s79, %s93
      %p95 = scmp.eq.s32.totalorder %s23, 0
      %p96 = por %p94, %p95
      %s98 = sadd.s32 %s97, 1
      %p101 = scmp.eq.s32.totalorder %s17, 3
      %p102 = scmp.ne.s32.totalorder %s97, %s99
      %p103 = scmp.eq.s32.totalorder %s17, 0
      %p104 = por %p102, %p103
      %p105 = scmp.ne.s32.totalorder %s97, %s99
      %p106 = scmp.eq.s32.totalorder %s22, 3
      %p107 = por %p105, %p106
      %p108 = scmp.ne.s32.totalorder %s99, %s100
      %p109 = scmp.eq.s32.totalorder %s22, 0
      %p110 = por %p108, %p109
      %p111 = scmp.ne.s32.totalorder %s99, %s100
      %p112 = scmp.eq.s32.totalorder %s23, 3
      %p113 = por %p111, %p112
      %p115 = scmp.ne.s32.totalorder %s100, %s114
      %p116 = scmp.eq.s32.totalorder %s23, 0
      %p117 = por %p115, %p116
      %s119 = sadd.s32 %s118, 1
      %p122 = scmp.eq.s32.totalorder %s17, 3
      %p123 = scmp.ne.s32.totalorder %s118, %s120
      %p124 = scmp.eq.s32.totalorder %s17, 0
      %p125 = por %p123, %p124
      %p126 = scmp.ne.s32.totalorder %s118, %s120
      %p127 = scmp.eq.s32.totalorder %s22, 3
      %p128 = por %p126, %p127
      %p129 = scmp.ne.s32.totalorder %s120, %s121
      %p130 = scmp.eq.s32.totalorder %s22, 0
      %p131 = por %p129, %p130
      %p132 = scmp.ne.s32.totalorder %s120, %s121
      %p133 = scmp.eq.s32.totalorder %s23, 3
      %p134 = por %p132, %p133
      %p136 = scmp.ne.s32.totalorder %s121, %s135
      %p137 = scmp.eq.s32.totalorder %s23, 0
      %p138 = por %p136, %p137
      %s140 = sadd.s32 %s139, 1
      %p143 = scmp.eq.s32.totalorder %s17, 3
      %p144 = scmp.ne.s32.totalorder %s139, %s141
      %p145 = scmp.eq.s32.totalorder %s17, 0
      %p146 = por %p144, %p145
      %p147 = scmp.ne.s32.totalorder %s139, %s141
      %p148 = scmp.eq.s32.totalorder %s22, 3
      %p149 = por %p147, %p148
      %p150 = scmp.ne.s32.totalorder %s141, %s142
      %p151 = scmp.eq.s32.totalorder %s22, 0
      %p152 = por %p150, %p151
      %p153 = scmp.ne.s32.totalorder %s141, %s142
      %p154 = scmp.eq.s32.totalorder %s23, 3
      %p155 = por %p153, %p154
      %p157 = scmp.ne.s32.totalorder %s142, %s156
      %p158 = scmp.eq.s32.totalorder %s23, 0
      %p159 = por %p157, %p158
      %s160 = smul.u32 %s26, %s25
      %s161 = smul.u32 %s35, %s39
      %s162 = ssub.s32 %s24, %s43
      %s163 = ssub.s32 %s160, %s161
      %s164 = sor.u32 %s162, %s163
      %p165 = scmp.eq.s32.totalorder %s164, 0
      %s167 = sadd.s32 %s166, 1
      %s168 = scalar_select %p165, %s166, %s167
      %p171 = pneg %p165
      %p172 = scmp.eq.s32.totalorder %s17, 3
      %p173 = por %p171, %p172
      %p174 = scmp.ne.s32.totalorder %s166, %s169
      %p175 = scmp.eq.s32.totalorder %s17, 0
      %p176 = por %p174, %p175
      %p177 = scmp.ne.s32.totalorder %s166, %s169
      %p178 = scmp.eq.s32.totalorder %s22, 3
      %p179 = por %p177, %p178
      %p180 = scmp.ne.s32.totalorder %s169, %s170
      %p181 = scmp.eq.s32.totalorder %s22, 0
      %p182 = por %p180, %p181
      %p183 = scmp.ne.s32.totalorder %s169, %s170
      %p184 = scmp.eq.s32.totalorder %s23, 3
      %p185 = por %p183, %p184
      %p187 = scmp.ne.s32.totalorder %s170, %s186
      %p188 = scmp.eq.s32.totalorder %s23, 0
      %p189 = por %p187, %p188
      %p190 = scmp.le.s32.totalorder 1, %s17
      %p191 = scmp.lt.s32.totalorder %s17, 5
      %p192 = pnand %p190, %p191
      %p193 = pneg %p192
      // Predicated region
      $region9: #{tpu_custom_call.1} parent=5 // pred_check
        _
      $region10: #{tpu_custom_call.1} parent=5 // pred_check_branch
        %195 = sbr.rel (%p192) target = $region12
      $region11: #{tpu_custom_call.1} parent=5 // pred_region
        %s196 = ssub.s32 %s17, 1
        // Predicated region
        $region13: #{tpu_custom_call.1} parent=11 // pred_check
          %p197 = pneg %p89
        $region14: #{tpu_custom_call.1} parent=11 // pred_check_branch
          %199 = sbr.rel (%p197) target = $region16
        $region15: #{tpu_custom_call.1} parent=11 // pred_region
          _
        $region16: #{tpu_custom_call.1} parent=11 // pred_fallthru
          _
        // Predicated region
        $region17: #{tpu_custom_call.1} parent=11 // pred_check
          %p200 = pneg %p110
        $region18: #{tpu_custom_call.1} parent=11 // pred_check_branch
          %202 = sbr.rel (%p200) target = $region20
        $region19: #{tpu_custom_call.1} parent=11 // pred_region
          _
        $region20: #{tpu_custom_call.1} parent=11 // pred_fallthru
          _
        // Predicated region
        $region21: #{tpu_custom_call.1} parent=11 // pred_check
          %p203 = pneg %p131
        $region22: #{tpu_custom_call.1} parent=11 // pred_check_branch
          %205 = sbr.rel (%p203) target = $region24
        $region23: #{tpu_custom_call.1} parent=11 // pred_region
          _
        $region24: #{tpu_custom_call.1} parent=11 // pred_fallthru
          _
        // Predicated region
        $region25: #{tpu_custom_call.1} parent=11 // pred_check
          %p206 = pneg %p152
        $region26: #{tpu_custom_call.1} parent=11 // pred_check_branch
          %208 = sbr.rel (%p206) target = $region28
        $region27: #{tpu_custom_call.1} parent=11 // pred_region
          _
        $region28: #{tpu_custom_call.1} parent=11 // pred_fallthru
          _
      $region12: #{tpu_custom_call.1} parent=5 // pred_fallthru
        _
      %p209 = scmp.lt.s32.totalorder %s17, 4
      // Predicated region
      $region29: #{tpu_custom_call.1} parent=5 // pred_check
        %p210 = pneg %p209
      $region30: #{tpu_custom_call.1} parent=5 // pred_check_branch
        %212 = sbr.rel (%p210) target = $region32
      $region31: #{tpu_custom_call.1} parent=5 // pred_region
        // Predicated region
        $region33: #{tpu_custom_call.1} parent=31 // pred_check
          %p213 = pneg %p62
        $region34: #{tpu_custom_call.1} parent=31 // pred_check_branch
          %215 = sbr.rel (%p213) target = $region36
        $region35: #{tpu_custom_call.1} parent=31 // pred_region
          %s216 = sand.u32 %s52, 1
          %s217 = scalar_lea.sflag [#allocation6], %s216
          %s218 = sand.u32 %s52, 1
          %s219 = smul.addr %s218, 256
          %s220 = scalar_lea.vmem [#allocation5], %s219
          %s221 = ssub.s32 1, %s25
          %s222 = smul.u32 %s26, %s221
          %s223 = smul.u32 8, %s222
          %225 = vsyncadd %s217, 0
          %s226 = smul.addr %s24, 32
          %s227 = sadd.s32 %s223, %s226
          %s228 = smul.addr %s227, 8
          %s229 = scalar_lea.hbm %s0, %s228
          %s230 = sshll.u32 %s229, 4
          %s231 = int_to_ptr.hbm [resolvable:$true] %s230
          %s232 = sshll.u32 %s220, 4
          %s233 = int_to_ptr.vmem [resolvable:$true] %s232
          %238 = dma.hbm_to_vmem [thread:$0]  %s231, 4096, %s233, %s217, 1024, 1024, 64
        $region36: #{tpu_custom_call.1} parent=31 // pred_fallthru
          _
      $region32: #{tpu_custom_call.1} parent=5 // pred_fallthru
        _
      %p239 = scmp.le.s32.totalorder 1, %s17
      %p240 = scmp.lt.s32.totalorder %s17, 5
      %p241 = pnand %p239, %p240
      %p242 = pneg %p241
      // Predicated region
      $region37: #{tpu_custom_call.1} parent=5 // pred_check
        _
      $region38: #{tpu_custom_call.1} parent=5 // pred_check_branch
        %244 = sbr.rel (%p241) target = $region40
      $region39: #{tpu_custom_call.1} parent=5 // pred_region
        %s245 = ssub.s32 %s17, 1
        %s246 = sand.u32 %s55, 1
        %s247 = scalar_lea.sflag [#allocation6], %s246
        %s248 = sand.u32 %s55, 1
        %s249 = smul.addr %s248, 256
        %s250 = scalar_lea.vmem [#allocation5], %s249
        // Predicated region
        $region41: #{tpu_custom_call.1} parent=39 // pred_check
          %p251 = pneg %p68
        $region42: #{tpu_custom_call.1} parent=39 // pred_check_branch
          %253 = sbr.rel (%p251) target = $region44
        $region43: #{tpu_custom_call.1} parent=39 // pred_region
          %255 = dma.done %s247, 4096
        $region44: #{tpu_custom_call.1} parent=39 // pred_fallthru
          _
        %s256 = sand.u32 %s55, 1
        %s257 = scalar_lea.sflag [#allocation6], %s256
        %s258 = sand.u32 %s55, 1
        %s259 = smul.addr %s258, 256
        %s260 = scalar_lea.vmem [#allocation5], %s259
        %p261 = pneg %p68
        %p262 = pneg %p65
        %p263 = pneg %p89
        %p264 = pneg %p86
        %p265 = pneg %p110
        %p266 = pneg %p107
        %p267 = pneg %p131
        %p268 = pneg %p128
        %p269 = pneg %p152
        %p270 = pneg %p149
        %p271 = pneg %p182
        %p272 = pneg %p179
        %s273 = sand.u32 %s169, 1
        %s274 = scalar_lea.sflag [#allocation7], %s273
        %s275 = sand.u32 %s169, 1
        %s276 = smul.addr %s275, 256
        %s277 = scalar_lea.vmem [#allocation8], %s276
        %s278 = ssub.s32 1, %s28
        %s279 = smul.u32 %s29, %s278
        %s280 = smul.u32 8, %s279
        %s281 = smul.u32 %s29, %s28
        %s282 = smul.u32 8, %s281
        %p283 = scmp.eq.s32.totalorder %s28, 0
        // Predicated region
        $region45: #{tpu_custom_call.1} parent=39 // pred_check
          %p284 = pneg %p283
        $region46: #{tpu_custom_call.1} parent=39 // pred_check_branch
          %286 = sbr.rel (%p284) target = $region48
        $region47: #{tpu_custom_call.1} parent=39 // pred_region
          %p287 = scmp.eq.s32.totalorder %s29, 0
          // Predicated region
          $region49: #{tpu_custom_call.1} parent=47 // pred_check
            %p288 = pneg %p287
          $region50: #{tpu_custom_call.1} parent=47 // pred_check_branch
            %290 = sbr.rel (%p288) target = $region52
          $region51: #{tpu_custom_call.1} parent=47 // pred_region
            %vm291 = vcmask 253952
            %292 = vst.msk [vmem:[#allocation3] sm:$0x1] %vm291, 0.0
          $region52: #{tpu_custom_call.1} parent=47 // pred_fallthru
            _
          %v293 = vld [vmem:[%s250] sm:$0xff]
          %v294 = vld [vmem:[%s250 + $0x8] sm:$0xff]
          %v295 = vld [vmem:[%s250 + $0x10] sm:$0xff]
          %v296 = vld [vmem:[%s250 + $0x18] sm:$0xff]
          %v297 = vld [vmem:[%s250 + $0x20] sm:$0xff]
          %v298 = vld [vmem:[%s250 + $0x28] sm:$0xff]
          %v299 = vld [vmem:[%s250 + $0x30] sm:$0xff]
          %v300 = vld [vmem:[%s250 + $0x38] sm:$0xff]
          %v301 = vld [vmem:[%s250 + $0x40] sm:$0xff]
          %v302 = vld [vmem:[%s250 + $0x48] sm:$0xff]
          %v303 = vld [vmem:[%s250 + $0x50] sm:$0xff]
          %v304 = vld [vmem:[%s250 + $0x58] sm:$0xff]
          %v305 = vld [vmem:[%s250 + $0x60] sm:$0xff]
          %v306 = vld [vmem:[%s250 + $0x68] sm:$0xff]
          %v307 = vld [vmem:[%s250 + $0x70] sm:$0xff]
          %v308 = vld [vmem:[%s250 + $0x78] sm:$0xff]
          %v309 = vld [vmem:[%s250 + $0x80] sm:$0xff]
          %v310 = vld [vmem:[%s250 + $0x88] sm:$0xff]
          %v311 = vld [vmem:[%s250 + $0x90] sm:$0xff]
          %v312 = vld [vmem:[%s250 + $0x98] sm:$0xff]
          %v313 = vld [vmem:[%s250 + $0xa0] sm:$0xff]
          %v314 = vld [vmem:[%s250 + $0xa8] sm:$0xff]
          %v315 = vld [vmem:[%s250 + $0xb0] sm:$0xff]
          %v316 = vld [vmem:[%s250 + $0xb8] sm:$0xff]
          %v317 = vld [vmem:[%s250 + $0xc0] sm:$0xff]
          %v318 = vld [vmem:[%s250 + $0xc8] sm:$0xff]
          %v319 = vld [vmem:[%s250 + $0xd0] sm:$0xff]
          %v320 = vld [vmem:[%s250 + $0xd8] sm:$0xff]
          %v321 = vld [vmem:[%s250 + $0xe0] sm:$0xff]
          %v322 = vld [vmem:[%s250 + $0xe8] sm:$0xff]
          %v323 = vld [vmem:[%s250 + $0xf0] sm:$0xff]
          %v324 = vld [vmem:[%s250 + $0xf8] sm:$0xff]
          %s325 = smul.u32 %s29, 1024
          %s326 = sshra.s32 %s325, 7
          %s327 = sand.u32 %s325, 127
          %s328 = smul.addr %s326, 8
          %s329 = scalar_lea.vmem [#allocation2], %s328
          %330 = vst [vmem:[%s329] sm:$0xff] %v293
          %331 = vst [vmem:[%s329 + $0x8] sm:$0xff] %v294
          %332 = vst [vmem:[%s329 + $0x10] sm:$0xff] %v295
          %333 = vst [vmem:[%s329 + $0x18] sm:$0xff] %v296
          %334 = vst [vmem:[%s329 + $0x20] sm:$0xff] %v297
          %335 = vst [vmem:[%s329 + $0x28] sm:$0xff] %v298
          %336 = vst [vmem:[%s329 + $0x30] sm:$0xff] %v299
          %337 = vst [vmem:[%s329 + $0x38] sm:$0xff] %v300
          %338 = vst [vmem:[%s329 + $0x40] sm:$0xff] %v301
          %339 = vst [vmem:[%s329 + $0x48] sm:$0xff] %v302
          %340 = vst [vmem:[%s329 + $0x50] sm:$0xff] %v303
          %341 = vst [vmem:[%s329 + $0x58] sm:$0xff] %v304
          %342 = vst [vmem:[%s329 + $0x60] sm:$0xff] %v305
          %343 = vst [vmem:[%s329 + $0x68] sm:$0xff] %v306
          %344 = vst [vmem:[%s329 + $0x70] sm:$0xff] %v307
          %345 = vst [vmem:[%s329 + $0x78] sm:$0xff] %v308
          %346 = vst [vmem:[%s329 + $0x80] sm:$0xff] %v309
          %347 = vst [vmem:[%s329 + $0x88] sm:$0xff] %v310
          %348 = vst [vmem:[%s329 + $0x90] sm:$0xff] %v311
          %349 = vst [vmem:[%s329 + $0x98] sm:$0xff] %v312
          %350 = vst [vmem:[%s329 + $0xa0] sm:$0xff] %v313
          %351 = vst [vmem:[%s329 + $0xa8] sm:$0xff] %v314
          %352 = vst [vmem:[%s329 + $0xb0] sm:$0xff] %v315
          %353 = vst [vmem:[%s329 + $0xb8] sm:$0xff] %v316
          %354 = vst [vmem:[%s329 + $0xc0] sm:$0xff] %v317
          %355 = vst [vmem:[%s329 + $0xc8] sm:$0xff] %v318
          %356 = vst [vmem:[%s329 + $0xd0] sm:$0xff] %v319
          %357 = vst [vmem:[%s329 + $0xd8] sm:$0xff] %v320
          %358 = vst [vmem:[%s329 + $0xe0] sm:$0xff] %v321
          %359 = vst [vmem:[%s329 + $0xe8] sm:$0xff] %v322
          %360 = vst [vmem:[%s329 + $0xf0] sm:$0xff] %v323
          %361 = vst [vmem:[%s329 + $0xf8] sm:$0xff] %v324
          %v362 = vld [vmem:[#allocation3] sm:$0x1]
          %v363 = vadd.f32 %v293, %v294
          %v364 = vadd.f32 %v363, %v295
          %v365 = vadd.f32 %v364, %v296
          %v366 = vadd.f32 %v365, %v297
          %v367 = vadd.f32 %v366, %v298
          %v368 = vadd.f32 %v367, %v299
          %v369 = vadd.f32 %v368, %v300
          %370 = vadd.xlane.f32.xlu0 %v369
          %v371 = vpop.xlane.xlu0 %370
          %v372 = vadd.f32 %v301, %v302
          %v373 = vadd.f32 %v372, %v303
          %v374 = vadd.f32 %v373, %v304
          %v375 = vadd.f32 %v374, %v305
          %v376 = vadd.f32 %v375, %v306
          %v377 = vadd.f32 %v376, %v307
          %v378 = vadd.f32 %v377, %v308
          %379 = vadd.xlane.f32.xlu0 %v378
          %v380 = vpop.xlane.xlu0 %379
          %v381 = vadd.f32 %v309, %v310
          %v382 = vadd.f32 %v381, %v311
          %v383 = vadd.f32 %v382, %v312
          %v384 = vadd.f32 %v383, %v313
          %v385 = vadd.f32 %v384, %v314
          %v386 = vadd.f32 %v385, %v315
          %v387 = vadd.f32 %v386, %v316
          %388 = vadd.xlane.f32.xlu0 %v387
          %v389 = vpop.xlane.xlu0 %388
          %v390 = vadd.f32 %v317, %v318
          %v391 = vadd.f32 %v390, %v319
          %v392 = vadd.f32 %v391, %v320
          %v393 = vadd.f32 %v392, %v321
          %v394 = vadd.f32 %v393, %v322
          %v395 = vadd.f32 %v394, %v323
          %v396 = vadd.f32 %v395, %v324
          %397 = vadd.xlane.f32.xlu0 %v396
          %v398 = vpop.xlane.xlu0 %397
          %v403 = vperm.slane %v371, 0
          %v404 = vperm.slane %v371, 1
          %v405 = vperm.slane %v371, 2
          %v406 = vperm.slane %v371, 3
          %v407 = vperm.slane %v371, 4
          %v408 = vperm.slane %v371, 5
          %v409 = vperm.slane %v371, 6
          %v410 = vperm.slane %v371, 7
          %v411 = vperm.slane %v380, 0
          %v412 = vperm.slane %v380, 1
          %v413 = vperm.slane %v380, 2
          %v414 = vperm.slane %v380, 3
          %v415 = vperm.slane %v380, 4
          %v416 = vperm.slane %v380, 5
          %v417 = vperm.slane %v380, 6
          %v418 = vperm.slane %v380, 7
          %v419 = vperm.slane %v389, 0
          %v420 = vperm.slane %v389, 1
          %v421 = vperm.slane %v389, 2
          %v422 = vperm.slane %v389, 3
          %v423 = vperm.slane %v389, 4
          %v424 = vperm.slane %v389, 5
          %v425 = vperm.slane %v389, 6
          %v426 = vperm.slane %v389, 7
          %v427 = vperm.slane %v398, 0
          %v428 = vperm.slane %v398, 1
          %v429 = vperm.slane %v398, 2
          %v430 = vperm.slane %v398, 3
          %v431 = vperm.slane %v398, 4
          %v432 = vperm.slane %v398, 5
          %v433 = vperm.slane %v398, 6
          %v434 = vperm.slane %v398, 7
          %435 = vst [vmem:[#allocation1] ss:$9 sm:$0xff] %v403
          %s436 = scalar_lea.vmem [#allocation1], 1
          %437 = vst [vmem:[%s436] ss:$9 sm:$0xff] %v404
          %s438 = scalar_lea.vmem [#allocation1], 2
          %439 = vst [vmem:[%s438] ss:$9 sm:$0xff] %v405
          %s440 = scalar_lea.vmem [#allocation1], 3
          %441 = vst [vmem:[%s440] ss:$9 sm:$0xff] %v406
          %s442 = scalar_lea.vmem [#allocation1], 4
          %443 = vst [vmem:[%s442] ss:$9 sm:$0xff] %v407
          %s444 = scalar_lea.vmem [#allocation1], 5
          %445 = vst [vmem:[%s444] ss:$9 sm:$0xff] %v408
          %s446 = scalar_lea.vmem [#allocation1], 6
          %447 = vst [vmem:[%s446] ss:$9 sm:$0xff] %v409
          %s448 = scalar_lea.vmem [#allocation1], 7
          %449 = vst [vmem:[%s448] ss:$9 sm:$0xff] %v410
          %v450 = vld [vmem:[#allocation1] sm:$0xff]
          %451 = vst [vmem:[#allocation1] ss:$9 sm:$0xff] %v411
          %452 = vst [vmem:[%s436] ss:$9 sm:$0xff] %v412
          %453 = vst [vmem:[%s438] ss:$9 sm:$0xff] %v413
          %454 = vst [vmem:[%s440] ss:$9 sm:$0xff] %v414
          %455 = vst [vmem:[%s442] ss:$9 sm:$0xff] %v415
          %456 = vst [vmem:[%s444] ss:$9 sm:$0xff] %v416
          %457 = vst [vmem:[%s446] ss:$9 sm:$0xff] %v417
          %458 = vst [vmem:[%s448] ss:$9 sm:$0xff] %v418
          %v459 = vld [vmem:[#allocation1] sm:$0xff]
          %460 = vst [vmem:[#allocation1] ss:$9 sm:$0xff] %v419
          %461 = vst [vmem:[%s436] ss:$9 sm:$0xff] %v420
          %462 = vst [vmem:[%s438] ss:$9 sm:$0xff] %v421
          %463 = vst [vmem:[%s440] ss:$9 sm:$0xff] %v422
          %464 = vst [vmem:[%s442] ss:$9 sm:$0xff] %v423
          %465 = vst [vmem:[%s444] ss:$9 sm:$0xff] %v424
          %466 = vst [vmem:[%s446] ss:$9 sm:$0xff] %v425
          %467 = vst [vmem:[%s448] ss:$9 sm:$0xff] %v426
          %v468 = vld [vmem:[#allocation1] sm:$0xff]
          %469 = vst [vmem:[#allocation1] ss:$9 sm:$0xff] %v427
          %470 = vst [vmem:[%s436] ss:$9 sm:$0xff] %v428
          %471 = vst [vmem:[%s438] ss:$9 sm:$0xff] %v429
          %472 = vst [vmem:[%s440] ss:$9 sm:$0xff] %v430
          %473 = vst [vmem:[%s442] ss:$9 sm:$0xff] %v431
          %474 = vst [vmem:[%s444] ss:$9 sm:$0xff] %v432
          %475 = vst [vmem:[%s446] ss:$9 sm:$0xff] %v433
          %476 = vst [vmem:[%s448] ss:$9 sm:$0xff] %v434
          %v477 = vld [vmem:[#allocation1] sm:$0xff]
          %478 = vset.pattern.permute.xlu0 0
          %479 = vperm.xlu0 %478, %v450
          %v480 = vpop.permute.xlu0 %479
          %481 = vset.pattern.permute.xlu0 0
          %482 = vperm.xlu0 %481, %v459
          %v483 = vpop.permute.xlu0 %482
          %484 = vset.pattern.permute.xlu0 0
          %485 = vperm.xlu0 %484, %v468
          %v486 = vpop.permute.xlu0 %485
          %487 = vset.pattern.permute.xlu0 0
          %488 = vperm.xlu0 %487, %v477
          %v489 = vpop.permute.xlu0 %488
          %v490 = vlaneseq
          %v491 = vand.u32 %v490, 127
          %v492 = vperm.slane %v480, %v491
          %v493 = vadd.s32 %v491, 4294967288
          %v494 = vperm.slane %v483, %v493
          %vm495 = vcmask 130112
          %v496 = vsel %vm495, %v494, %v492
          %v497 = vadd.s32 %v491, 4294967280
          %v498 = vperm.slane %v486, %v497
          %vm499 = vcmask 195712
          %v500 = vsel %vm499, %v498, %v496
          %v501 = vadd.s32 %v491, 4294967272
          %v502 = vperm.slane %v489, %v501
          %vm503 = vcmask 261312
          %v504 = vsel %vm503, %v502, %v500
          %v506 = vadd.f32 %v362, %v504
          %vm507 = vcmask 253952
          %508 = vst.msk [vmem:[#allocation3] sm:$0x1] %vm507, %v506
          // Predicated region
          $region53: #{tpu_custom_call.1} parent=47 // pred_check
            %p509 = pneg %p287
          $region54: #{tpu_custom_call.1} parent=47 // pred_check_branch
            %511 = sbr.rel (%p509) target = $region56
          $region55: #{tpu_custom_call.1} parent=47 // pred_region
            %v512 = vld [vmem:[#allocation3] sm:$0x1]
            %v513 = vmul.f32 %v512, 0.0009765625
            %v514 = vld [vmem:[%s1] sm:$0xff]
            %v515 = vld [vmem:[%s1 + $0x8] sm:$0xff]
            %v516 = vld [vmem:[%s1 + $0x10] sm:$0xff]
            %v517 = vld [vmem:[%s1 + $0x18] sm:$0xff]
            %v518 = vld [vmem:[%s2] sm:$0x1]
            %vm519 = vcmask 261120
            %v521 = vsel %vm519, %v513, 0
            %523 = vmatpush.msra.mxu0 0.0
            %524 = vmatpush.msra.mxu0 0.0
            %525 = vmatpush.msra.mxu0 0.0
            %526 = vmatpush.msra.mxu0 0.0
            %527 = vmatpush.msra.mxu0 0.0
            %528 = vmatpush.msra.mxu0 0.0
            %529 = vmatpush.msra.mxu0 0.0
            %530 = vmatpush.msra.mxu0 0.0
            %531 = vmatpush.msra.mxu0 0.0
            %532 = vmatpush.msra.mxu0 0.0
            %533 = vmatpush.msra.mxu0 0.0
            %534 = vmatpush.msra.mxu0 0.0
            %535 = vmatpush.msra.mxu0 %v517
            %536 = vmatpush.msra.mxu0 %v516
            %537 = vmatpush.msra.mxu0 %v515
            %538 = vmatpush.msra.mxu0 %v514
            %539 = vmatmul.f32.gmra.mxu0 %v521
            %v540 = vpop.f32.mrf.mxu0
            %v541 = vadd.f32 %v518, %v540
            %542 = vdwg.mxu0
            %v543 = vmax.f32 %v541, 0.0
            %v544 = vld [vmem:[%s3] sm:$0x3]
            %v545 = vld [vmem:[%s4] sm:$0x1]
            %vm546 = vcmask 15360
            %v548 = vsel %vm546, %v543, 0
            %vm550 = vcmask 1041408
            %v552 = vsel %vm550, %v544, 0
            %554 = vmatpush.msra.mxu0 0.0
            %555 = vmatpush.msra.mxu0 0.0
            %556 = vmatpush.msra.mxu0 0.0
            %557 = vmatpush.msra.mxu0 0.0
            %558 = vmatpush.msra.mxu0 0.0
            %559 = vmatpush.msra.mxu0 0.0
            %560 = vmatpush.msra.mxu0 0.0
            %561 = vmatpush.msra.mxu0 0.0
            %562 = vmatpush.msra.mxu0 0.0
            %563 = vmatpush.msra.mxu0 0.0
            %564 = vmatpush.msra.mxu0 0.0
            %565 = vmatpush.msra.mxu0 0.0
            %566 = vmatpush.msra.mxu0 0.0
            %567 = vmatpush.msra.mxu0 0.0
            %568 = vmatpush.msra.mxu0 0.0
            %569 = vmatpush.msra.mxu0 %v552
            %570 = vmatmul.f32.gmra.mxu0 %v548
            %v571 = vpop.f32.mrf.mxu0
            %v572 = vadd.f32 %v545, %v571
            %573 = vdwg.mxu0
            %v574 = vxor.u32 %v572, 2147483648
            %v575 = vmul.f32 %v574, 1.442695
            %v576 = vpow.pop %v575
            %v577 = vadd.f32 %v576, 1.0
            %v578 = vrcp.pop %v577
            %v579 = vmul.f32 %v577, %v578
            %v580 = vsub.f32 1.0, %v579
            %v581 = vmul.f32 %v578, %v580
            %v582 = vadd.f32 %v578, %v581
            %vm583 = vweird.f32 %v577
            %vm584 = vweird.f32 %v578
            %vm585 = vmor %vm583, %vm584
            %v586 = vsel %vm585, %v578, %v582
            %v587 = vand.u32 2147483647, %v577
            %vm588 = vcmp.eq.f32.partialorder %v587, 8.507059e+37
            %v589 = vand.u32 %v577, 2147483648
            %v590 = vor.u32 1.1754944e-38, %v589
            %v591 = vsel %vm588, %v590, %v586
            %v592 = vmul.f32 1.0, %v591
            %v593 = vperm.slane %v592, 0
            %v594 = vlaneseq
            %v595 = vshrl.u32 %v594, 7
            %597 = vset.pattern.permute.xlu0 %v595
            %598 = vperm.xlu0 %597, %v593
            %v599 = vpop.permute.xlu0 %598
            %v600 = vlaneseq
            %v601 = vshrl.u32 %v600, 7
            %v602 = vadd.s32 %v601, 8
            %603 = vset.pattern.permute.xlu0 %v602
            %604 = vperm.xlu0 %603, %v593
            %v605 = vpop.permute.xlu0 %604
            %v606 = vlaneseq
            %v607 = vshrl.u32 %v606, 7
            %v608 = vadd.s32 %v607, 16
            %609 = vset.pattern.permute.xlu0 %v608
            %610 = vperm.xlu0 %609, %v593
            %v611 = vpop.permute.xlu0 %610
            %v612 = vlaneseq
            %v613 = vshrl.u32 %v612, 7
            %v614 = vadd.s32 %v613, 24
            %615 = vset.pattern.permute.xlu0 %v614
            %616 = vperm.xlu0 %615, %v593
            %v617 = vpop.permute.xlu0 %616
            %vm618 = vcmask 7168
            %619 = vst.msk [vmem:[#allocation4] sm:$0xff] %vm618, %v599
            %620 = vst.msk [vmem:[#allocation4 + $0x8] sm:$0xff] %vm618, %v605
            %621 = vst.msk [vmem:[#allocation4 + $0x10] sm:$0xff] %vm618, %v611
            %622 = vst.msk [vmem:[#allocation4 + $0x18] sm:$0xff] %vm618, %v617
          $region56: #{tpu_custom_call.1} parent=47 // pred_fallthru
            _
        $region48: #{tpu_custom_call.1} parent=39 // pred_fallthru
          _
        %p623 = scmp.eq.s32.totalorder %s28, 1
        // Predicated region
        $region57: #{tpu_custom_call.1} parent=39 // pred_check
          %p624 = pneg %p623
        $region58: #{tpu_custom_call.1} parent=39 // pred_check_branch
          %626 = sbr.rel (%p624) target = $region60
        $region59: #{tpu_custom_call.1} parent=39 // pred_region
          %s627 = smul.u32 %s29, 1024
          %s628 = sshra.s32 %s627, 7
          %s629 = sand.u32 %s627, 127
          %s630 = smul.addr %s628, 8
          %s631 = scalar_lea.vmem [#allocation2], %s630
          %v632 = vld [vmem:[%s631] sm:$0xff]
          %v633 = vld [vmem:[%s631 + $0x8] sm:$0xff]
          %v634 = vld [vmem:[%s631 + $0x10] sm:$0xff]
          %v635 = vld [vmem:[%s631 + $0x18] sm:$0xff]
          %v636 = vld [vmem:[%s631 + $0x20] sm:$0xff]
          %v637 = vld [vmem:[%s631 + $0x28] sm:$0xff]
          %v638 = vld [vmem:[%s631 + $0x30] sm:$0xff]
          %v639 = vld [vmem:[%s631 + $0x38] sm:$0xff]
          %v640 = vld [vmem:[%s631 + $0x40] sm:$0xff]
          %v641 = vld [vmem:[%s631 + $0x48] sm:$0xff]
          %v642 = vld [vmem:[%s631 + $0x50] sm:$0xff]
          %v643 = vld [vmem:[%s631 + $0x58] sm:$0xff]
          %v644 = vld [vmem:[%s631 + $0x60] sm:$0xff]
          %v645 = vld [vmem:[%s631 + $0x68] sm:$0xff]
          %v646 = vld [vmem:[%s631 + $0x70] sm:$0xff]
          %v647 = vld [vmem:[%s631 + $0x78] sm:$0xff]
          %v648 = vld [vmem:[%s631 + $0x80] sm:$0xff]
          %v649 = vld [vmem:[%s631 + $0x88] sm:$0xff]
          %v650 = vld [vmem:[%s631 + $0x90] sm:$0xff]
          %v651 = vld [vmem:[%s631 + $0x98] sm:$0xff]
          %v652 = vld [vmem:[%s631 + $0xa0] sm:$0xff]
          %v653 = vld [vmem:[%s631 + $0xa8] sm:$0xff]
          %v654 = vld [vmem:[%s631 + $0xb0] sm:$0xff]
          %v655 = vld [vmem:[%s631 + $0xb8] sm:$0xff]
          %v656 = vld [vmem:[%s631 + $0xc0] sm:$0xff]
          %v657 = vld [vmem:[%s631 + $0xc8] sm:$0xff]
          %v658 = vld [vmem:[%s631 + $0xd0] sm:$0xff]
          %v659 = vld [vmem:[%s631 + $0xd8] sm:$0xff]
          %v660 = vld [vmem:[%s631 + $0xe0] sm:$0xff]
          %v661 = vld [vmem:[%s631 + $0xe8] sm:$0xff]
          %v662 = vld [vmem:[%s631 + $0xf0] sm:$0xff]
          %v663 = vld [vmem:[%s631 + $0xf8] sm:$0xff]
          %v664 = vld [vmem:[#allocation4] sm:$0xff]
          %v665 = vld [vmem:[#allocation4 + $0x8] sm:$0xff]
          %v666 = vld [vmem:[#allocation4 + $0x10] sm:$0xff]
          %v667 = vld [vmem:[#allocation4 + $0x18] sm:$0xff]
          %669 = vset.pattern.permute.xlu0 0
          %670 = vperm.xlu0 %669, %v664
          %v671 = vpop.permute.xlu0 %670
          %674 = vset.pattern.permute.xlu0 0
          %675 = vperm.xlu0 %674, %v665
          %v676 = vpop.permute.xlu0 %675
          %679 = vset.pattern.permute.xlu0 0
          %680 = vperm.xlu0 %679, %v666
          %v681 = vpop.permute.xlu0 %680
          %684 = vset.pattern.permute.xlu0 0
          %685 = vperm.xlu0 %684, %v667
          %v686 = vpop.permute.xlu0 %685
          %v688 = vmul.f32 %v632, %v671
          %v689 = vmul.f32 %v633, %v671
          %v690 = vmul.f32 %v634, %v671
          %v691 = vmul.f32 %v635, %v671
          %v692 = vmul.f32 %v636, %v671
          %v693 = vmul.f32 %v637, %v671
          %v694 = vmul.f32 %v638, %v671
          %v695 = vmul.f32 %v639, %v671
          %v696 = vmul.f32 %v640, %v676
          %v697 = vmul.f32 %v641, %v676
          %v698 = vmul.f32 %v642, %v676
          %v699 = vmul.f32 %v643, %v676
          %v700 = vmul.f32 %v644, %v676
          %v701 = vmul.f32 %v645, %v676
          %v702 = vmul.f32 %v646, %v676
          %v703 = vmul.f32 %v647, %v676
          %v704 = vmul.f32 %v648, %v681
          %v705 = vmul.f32 %v649, %v681
          %v706 = vmul.f32 %v650, %v681
          %v707 = vmul.f32 %v651, %v681
          %v708 = vmul.f32 %v652, %v681
          %v709 = vmul.f32 %v653, %v681
          %v710 = vmul.f32 %v654, %v681
          %v711 = vmul.f32 %v655, %v681
          %v712 = vmul.f32 %v656, %v686
          %v713 = vmul.f32 %v657, %v686
          %v714 = vmul.f32 %v658, %v686
          %v715 = vmul.f32 %v659, %v686
          %v716 = vmul.f32 %v660, %v686
          %v717 = vmul.f32 %v661, %v686
          %v718 = vmul.f32 %v662, %v686
          %v719 = vmul.f32 %v663, %v686
          %720 = vst [vmem:[%s277] sm:$0xff] %v688
          %721 = vst [vmem:[%s277 + $0x8] sm:$0xff] %v689
          %722 = vst [vmem:[%s277 + $0x10] sm:$0xff] %v690
          %723 = vst [vmem:[%s277 + $0x18] sm:$0xff] %v691
          %724 = vst [vmem:[%s277 + $0x20] sm:$0xff] %v692
          %725 = vst [vmem:[%s277 + $0x28] sm:$0xff] %v693
          %726 = vst [vmem:[%s277 + $0x30] sm:$0xff] %v694
          %727 = vst [vmem:[%s277 + $0x38] sm:$0xff] %v695
          %728 = vst [vmem:[%s277 + $0x40] sm:$0xff] %v696
          %729 = vst [vmem:[%s277 + $0x48] sm:$0xff] %v697
          %730 = vst [vmem:[%s277 + $0x50] sm:$0xff] %v698
          %731 = vst [vmem:[%s277 + $0x58] sm:$0xff] %v699
          %732 = vst [vmem:[%s277 + $0x60] sm:$0xff] %v700
          %733 = vst [vmem:[%s277 + $0x68] sm:$0xff] %v701
          %734 = vst [vmem:[%s277 + $0x70] sm:$0xff] %v702
          %735 = vst [vmem:[%s277 + $0x78] sm:$0xff] %v703
          %736 = vst [vmem:[%s277 + $0x80] sm:$0xff] %v704
          %737 = vst [vmem:[%s277 + $0x88] sm:$0xff] %v705
          %738 = vst [vmem:[%s277 + $0x90] sm:$0xff] %v706
          %739 = vst [vmem:[%s277 + $0x98] sm:$0xff] %v707
          %740 = vst [vmem:[%s277 + $0xa0] sm:$0xff] %v708
          %741 = vst [vmem:[%s277 + $0xa8] sm:$0xff] %v709
          %742 = vst [vmem:[%s277 + $0xb0] sm:$0xff] %v710
          %743 = vst [vmem:[%s277 + $0xb8] sm:$0xff] %v711
          %744 = vst [vmem:[%s277 + $0xc0] sm:$0xff] %v712
          %745 = vst [vmem:[%s277 + $0xc8] sm:$0xff] %v713
          %746 = vst [vmem:[%s277 + $0xd0] sm:$0xff] %v714
          %747 = vst [vmem:[%s277 + $0xd8] sm:$0xff] %v715
          %748 = vst [vmem:[%s277 + $0xe0] sm:$0xff] %v716
          %749 = vst [vmem:[%s277 + $0xe8] sm:$0xff] %v717
          %750 = vst [vmem:[%s277 + $0xf0] sm:$0xff] %v718
          %751 = vst [vmem:[%s277 + $0xf8] sm:$0xff] %v719
        $region60: #{tpu_custom_call.1} parent=39 // pred_fallthru
          _
        %s752 = sand.u32 %s169, 1
        %s753 = scalar_lea.sflag [#allocation7], %s752
        %s754 = sand.u32 %s169, 1
        %s755 = smul.addr %s754, 256
        %s756 = scalar_lea.vmem [#allocation8], %s755
        // Predicated region
        $region61: #{tpu_custom_call.1} parent=39 // pred_check
          %p757 = pneg %p179
        $region62: #{tpu_custom_call.1} parent=39 // pred_check_branch
          %759 = sbr.rel (%p757) target = $region64
        $region63: #{tpu_custom_call.1} parent=39 // pred_region
          %s760 = smul.u32 %s29, %s28
          %s761 = smul.u32 8, %s760
          %763 = vsyncadd %s753, 0
          %s764 = smul.addr %s27, 32
          %s765 = sadd.s32 %s761, %s764
          %s766 = smul.addr %s765, 8
          %s767 = scalar_lea.hbm %s5, %s766
          %s768 = sshll.u32 %s756, 4
          %s769 = int_to_ptr.vmem [resolvable:$true] %s768
          %s770 = sshll.u32 %s767, 4
          %s771 = int_to_ptr.hbm [resolvable:$true] %s770
          %776 = dma.vmem_to_hbm [thread:$0]  %s769, 4096, %s771, %s753, 1024, 1024, 64
        $region64: #{tpu_custom_call.1} parent=39 // pred_fallthru
          _
      $region40: #{tpu_custom_call.1} parent=5 // pred_fallthru
        _
      %p777 = scmp.le.s32.totalorder 2, %s17
      // Predicated region
      $region65: #{tpu_custom_call.1} parent=5 // pred_check
        %p778 = pneg %p777
      $region66: #{tpu_custom_call.1} parent=5 // pred_check_branch
        %780 = sbr.rel (%p778) target = $region68
      $region67: #{tpu_custom_call.1} parent=5 // pred_region
        %s781 = ssub.s32 %s17, 2
        // Predicated region
        $region69: #{tpu_custom_call.1} parent=67 // pred_check
          %p782 = pneg %p185
        $region70: #{tpu_custom_call.1} parent=67 // pred_check_branch
          %784 = sbr.rel (%p782) target = $region72
        $region71: #{tpu_custom_call.1} parent=67 // pred_region
          %s785 = sand.u32 %s170, 1
          %s786 = scalar_lea.sflag [#allocation7], %s785
          %s787 = sand.u32 %s170, 1
          %s788 = smul.addr %s787, 256
          %s789 = scalar_lea.vmem [#allocation8], %s788
          %791 = dma.done %s786, 4096
        $region72: #{tpu_custom_call.1} parent=67 // pred_fallthru
          _
      $region68: #{tpu_custom_call.1} parent=5 // pred_fallthru
        _
    $region6: #{tpu_custom_call.1} parent=1 // loop_footer
      %s21 = sadd.s32 1, %s17
    $region7: #{tpu_custom_call.1} parent=1 // loop_footer_branch
      %16 = sbr.rel target = $region3
    $region8: #{tpu_custom_call.1} parent=1 // loop_exit
      _
    %792 = vsyncpa [#allocation6], 1
    %s793 = scalar_lea.sflag [#allocation6], 1
    %794 = vsyncpa %s793, 1
    %795 = vsyncpa [#allocation7], 1
    %s796 = scalar_lea.sflag [#allocation7], 1
    %797 = vsyncpa %s796, 1

</llo_original>
